<compile_context>
chip_gen: v7x
topology: tpu7x:2x2x1
jax: 0.10.0
libtpu: 0.0.40
codegen_flags: <defaults>
</compile_context>

<pallas_src>
import jax
import jax.numpy as jnp
from jax.experimental import pallas as pl
from jax.experimental.pallas import tpu as pltpu


# ---------------------------------------------------------------------------
# Kernels
# ---------------------------------------------------------------------------

def _fused_kernel(x_ref, w1_ref, w2_ref, o_ref):
    """Pool + shared MLP + scale for one (b_blk, C, HW) batch block."""
    # Pools read straight from the ref; the tile is not held live across the MLP.
    max_pool = jnp.max(x_ref[...], axis=-1).astype(jnp.float32)        # (b_blk, C)
    avg_pool = jnp.mean(x_ref[...], axis=-1, dtype=jnp.float32)        # (b_blk, C)

    def fc(p):                                                          # shared MLP
        h = jnp.maximum(jnp.dot(p, w1_ref[...],
                                preferred_element_type=jnp.float32), 0.0)
        return jnp.dot(h, w2_ref[...], preferred_element_type=jnp.float32)

    scale = jax.nn.sigmoid(fc(max_pool) + fc(avg_pool))                 # (b_blk, C) f32
    o_ref[...] = (x_ref[...].astype(jnp.float32)
                  * scale[:, :, None]).astype(o_ref.dtype)


def _pool_kernel(x_ref, mx_ref, av_ref):
    """Row-block pooling over the full spatial extent: (r_blk, HW) -> (r_blk, 1)."""
    mx_ref[...] = jnp.max(x_ref[...], axis=-1, keepdims=True).astype(jnp.float32)
    av_ref[...] = jnp.mean(x_ref[...], axis=-1, keepdims=True, dtype=jnp.float32)


def _mlp_scale_kernel(mx_ref, av_ref, w1_ref, w2_ref, s_ref):
    """Tiny shared-MLP + sigmoid on the pooled (B, C) matrices."""
    def fc(p):
        h = jnp.maximum(jnp.dot(p, w1_ref[...],
                                preferred_element_type=jnp.float32), 0.0)
        return jnp.dot(h, w2_ref[...], preferred_element_type=jnp.float32)

    s_ref[...] = jax.nn.sigmoid(fc(mx_ref[...]) + fc(av_ref[...])).astype(s_ref.dtype)


def _apply_scale_kernel(x_ref, s_ref, o_ref):
    """Broadcast-multiply a (r_blk, HW) row block by its (r_blk, 1) scale."""
    o_ref[...] = (x_ref[...].astype(jnp.float32) * s_ref[...]).astype(o_ref.dtype)


# ---------------------------------------------------------------------------
# Tiling / budgeting helpers
# ---------------------------------------------------------------------------

_MIB = 1 << 20


def _tpu_vmem_and_cores():
    """(physical VMEM bytes per TensorCore, #TensorCores sharing a chip)."""
    try:
        vmem = int(pltpu.get_tpu_info().vmem_capacity_bytes)
    except Exception:
        vmem = 64 * _MIB              # conservative default: v7x per-TC VMEM
    # 64 MiB per-TC VMEM is the v7x signature, the 2-TensorCore generation.
    num_tc = 2 if vmem <= 64 * _MIB else 1
    return vmem, num_tc


def _budgets(vmem_cap, vmem_budget_bytes):
    """(scoped vmem limit, byte budget for the double-buffered x tiles)."""
    # ~48 MiB limit on v7x (64 MiB physical), ~100 MiB on v5e/v6e (128 MiB);
    # keep headroom for weight double-buffers and Mosaic internal scratch.
    limit = min(int(vmem_cap * 0.78), vmem_cap - 16 * _MIB)
    budget = vmem_budget_bytes if vmem_budget_bytes is not None else limit - 8 * _MIB
    return limit, max(budget, 64 * 1024)


def _largest_divisor_leq(n, cap):
    cap = max(1, min(cap, n))
    for d in range(cap, 0, -1):
        if n % d == 0:
            return d
    return 1


def _pick_b_blk(B, per_b_bytes, tile_budget_bytes, num_tc):
    """Largest divisor of B whose double-buffered in+out tiles fit the budget."""
    fit = max(1, tile_budget_bytes // (4 * per_b_bytes))     # 2 bufs x (in + out)
    b_blk = _largest_divisor_leq(B, fit)
    if num_tc >= 2:
        # >= 2 grid steps per TensorCore so each core pipelines DMA vs compute,
        # unless that would shrink an already-comfortable (>= 2 MiB) tile.
        capped = _largest_divisor_leq(B, min(fit, max(1, B // (2 * num_tc))))
        if capped * per_b_bytes >= 2 * _MIB or b_blk * per_b_bytes < 2 * _MIB:
            b_blk = capped
    return b_blk


def _pick_r_blk(n_rows, per_row_bytes, tile_budget_bytes):
    """Row block for the (B*C, HW) fallback: multiple of 8 (sublane) or full."""
    fit = max(1, tile_budget_bytes // (4 * per_row_bytes))
    if n_rows <= fit:
        return n_rows
    start = min(fit, n_rows)
    start -= start % 8
    for d in range(start, 0, -8):
        if n_rows % d == 0:
            return d
    # TODO(synk): no multiple-of-8 divisor of B*C fits the budget (exotic
    # shapes only); fall back to the full extent and rely on the vmem limit.
    return n_rows


# ---------------------------------------------------------------------------
# Wrapper
# ---------------------------------------------------------------------------

def channel_attention(x, w1, w2, *, vmem_budget_bytes=None):
    """CBAM channel attention. x: (B, C, H, W); w1: (C, C//r); w2: (C//r, C)."""
    B, C, H, W = x.shape
    HW = H * W
    hidden = w1.shape[1]
    itemsize = jnp.dtype(x.dtype).itemsize

    vmem_cap, num_tc = _tpu_vmem_and_cores()
    vmem_limit, tile_budget = _budgets(vmem_cap, vmem_budget_bytes)

    def cparams(sem):
        return pltpu.CompilerParams(dimension_semantics=sem,
                                    vmem_limit_bytes=vmem_limit)

    x3 = x.reshape(B, C, HW)
    per_b_bytes = C * HW * itemsize

    if 4 * per_b_bytes <= tile_budget:
        # ------------------- fused single-pass path -------------------
        b_blk = _pick_b_blk(B, per_b_bytes, tile_budget, num_tc)
        out = pl.pallas_call(
            _fused_kernel,
            out_shape=jax.ShapeDtypeStruct((B, C, HW), x.dtype),
            grid_spec=pltpu.PrefetchScalarGridSpec(
                num_scalar_prefetch=0,
                grid=(B // b_blk,),
                in_specs=[
                    pl.BlockSpec((b_blk, C, HW), lambda b: (b, 0, 0)),
                    pl.BlockSpec((C, hidden), lambda b: (0, 0)),
                    pl.BlockSpec((hidden, C), lambda b: (0, 0)),
                ],
                out_specs=pl.BlockSpec((b_blk, C, HW), lambda b: (b, 0, 0)),
            ),
            compiler_params=cparams(("parallel",)),
        )(x3, w1, w2)
        return out.reshape(B, C, H, W)

    # -------- two-pass fallback: per-batch slab exceeds the tile budget --------
    n_rows = B * C
    x2 = x3.reshape(n_rows, HW)
    r_blk = _pick_r_blk(n_rows, HW * itemsize, tile_budget)
    n_steps = n_rows // r_blk

    # Pass 1: per-(batch, channel) max / mean pooling over the spatial axis.
    mx, av = pl.pallas_call(
        _pool_kernel,
        out_shape=(jax.ShapeDtypeStruct((n_rows, 1), jnp.float32),
                   jax.ShapeDtypeStruct((n_rows, 1), jnp.float32)),
        grid_spec=pltpu.PrefetchScalarGridSpec(
            num_scalar_prefetch=0,
            grid=(n_steps,),
            in_specs=[pl.BlockSpec((r_blk, HW), lambda i: (i, 0))],
            out_specs=[pl.BlockSpec((r_blk, 1), lambda i: (i, 0)),
                       pl.BlockSpec((r_blk, 1), lambda i: (i, 0))],
        ),
        compiler_params=cparams(("parallel",)),
    )(x2)

    # Pass 2: tiny shared MLP + sigmoid -> (B, C) channel scale.
    scale = pl.pallas_call(
        _mlp_scale_kernel,
        out_shape=jax.ShapeDtypeStruct((B, C), jnp.float32),
        grid_spec=pltpu.PrefetchScalarGridSpec(
            num_scalar_prefetch=0,
            grid=(1,),
            in_specs=[
                pl.BlockSpec((B, C), lambda i: (0, 0)),
                pl.BlockSpec((B, C), lambda i: (0, 0)),
                pl.BlockSpec((C, hidden), lambda i: (0, 0)),
                pl.BlockSpec((hidden, C), lambda i: (0, 0)),
            ],
            out_specs=pl.BlockSpec((B, C), lambda i: (0, 0)),
        ),
        compiler_params=cparams(("arbitrary",)),
    )(mx.reshape(B, C), av.reshape(B, C), w1, w2)

    # Pass 3: re-stream x in row blocks and apply the per-channel scale.
    out = pl.pallas_call(
        _apply_scale_kernel,
        out_shape=jax.ShapeDtypeStruct((n_rows, HW), x.dtype),
        grid_spec=pltpu.PrefetchScalarGridSpec(
            num_scalar_prefetch=0,
            grid=(n_steps,),
            in_specs=[pl.BlockSpec((r_blk, HW), lambda i: (i, 0)),
                      pl.BlockSpec((r_blk, 1), lambda i: (i, 0))],
            out_specs=pl.BlockSpec((r_blk, HW), lambda i: (i, 0)),
        ),
        compiler_params=cparams(("parallel",)),
    )(x2, scale.reshape(n_rows, 1))
    return out.reshape(B, C, H, W)


def channel_attention_ref(x, w1, w2):
    """Pure-JAX reference mirroring the PyTorch forward exactly."""
    max_pool = jnp.max(x, axis=(2, 3))                    # (B, C)
    avg_pool = jnp.mean(x, axis=(2, 3))                   # (B, C)

    def fc(v):
        return jnp.maximum(v @ w1, 0.0) @ w2

    scale = jax.nn.sigmoid(fc(max_pool) + fc(avg_pool))   # (B, C)
    return scale[:, :, None, None] * x


if __name__ == "__main__":
    B, C, H, W = 2, 32, 16, 16
    ratio = 16
    hidden = C // ratio  # 2

    key = jax.random.PRNGKey(0)
    kx, k1, k2 = jax.random.split(key, 3)

    x = jax.random.normal(kx, (B, C, H, W), dtype=jnp.float32)
    # PyTorch nn.Linear(C, C//r) stores weight of shape (C//r, C); we keep the
    # transposed (C, C//r) layout so y = v @ W.
    w1 = jax.random.normal(k1, (C, hidden), dtype=jnp.float32) * 0.1
    w2 = jax.random.normal(k2, (hidden, C), dtype=jnp.float32) * 0.1

    ref = channel_attention_ref(x, w1, w2)

    # Fast (fused) path.
    out = jax.block_until_ready(channel_attention(x, w1, w2))
    assert out.shape == (B, C, H, W)
    assert jnp.allclose(out, ref, atol=1e-5, rtol=1e-5)

    # Force the two-pass fallback (used for large feature maps) with a tiny
    # tile budget to verify it on-device as well.
    out2 = jax.block_until_ready(
        channel_attention(x, w1, w2, vmem_budget_bytes=96 * 1024))
    assert out2.shape == (B, C, H, W)
    assert jnp.allclose(out2, ref, atol=1e-5, rtol=1e-5)

    print("KERNEL_OK")
</pallas_src>

<mosaic_0001>
module attributes {stable_mosaic.version = 11 : i64} {
  func.func @_fused_kernel(%arg0: i32, %arg1: memref<1x32x256xf32, #tpu.memory_space<vmem>>, %arg2: memref<32x2xf32, #tpu.memory_space<vmem>>, %arg3: memref<2x32xf32, #tpu.memory_space<vmem>>, %arg4: memref<1x32x256xf32, #tpu.memory_space<vmem>>) attributes {dimension_semantics = [#tpu.dimension_semantics<parallel>], iteration_bounds = array<i64: 2>, scalar_prefetch = 0 : i64, scratch_operands = 0 : i64, tpu.core_type = #tpu.core_type<tc>, window_params = [{transform_indices = @transform_0, window_bounds = array<i64: 1, 32, 256>}, {pipeline_mode = #tpu.pipeline_mode<synchronous>, transform_indices = @transform_1, window_bounds = array<i64: 32, 2>}, {pipeline_mode = #tpu.pipeline_mode<synchronous>, transform_indices = @transform_2, window_bounds = array<i64: 2, 32>}, {transform_indices = @transform_3, window_bounds = array<i64: 1, 32, 256>}]} {
    %c0 = arith.constant 0 : index
    %c0_0 = arith.constant 0 : index
    %c0_1 = arith.constant 0 : index
    %0 = vector.load %arg1[%c0, %c0_0, %c0_1] : memref<1x32x256xf32, #tpu.memory_space<vmem>>, vector<1x32x256xf32>
    %cst = arith.constant dense<0xFF800000> : vector<1x32xf32>
    %1 = vector.multi_reduction <maximumf>, %0, %cst [2] : vector<1x32x256xf32> to vector<1x32xf32>
    %c0_2 = arith.constant 0 : index
    %c0_3 = arith.constant 0 : index
    %c0_4 = arith.constant 0 : index
    %2 = vector.load %arg1[%c0_2, %c0_3, %c0_4] : memref<1x32x256xf32, #tpu.memory_space<vmem>>, vector<1x32x256xf32>
    %cst_5 = arith.constant dense<0.000000e+00> : vector<1x32xf32>
    %3 = vector.multi_reduction <add>, %2, %cst_5 [2] : vector<1x32x256xf32> to vector<1x32xf32>
    %cst_6 = arith.constant 2.560000e+02 : f32
    %4 = vector.broadcast %cst_6 : f32 to vector<1x32xf32>
    %5 = arith.divf %3, %4 : vector<1x32xf32>
    %c0_7 = arith.constant 0 : index
    %c0_8 = arith.constant 0 : index
    %6 = vector.load %arg2[%c0_7, %c0_8] : memref<32x2xf32, #tpu.memory_space<vmem>>, vector<32x2xf32>
    %cst_9 = arith.constant dense<0.000000e+00> : vector<1x2xf32>
    %7 = tpu.matmul %1, %6, %cst_9 {dimension_numbers = #tpu.dot_dimension_numbers<[1], [0], [0], [1], [0, 0, 1, 1], [], []>} : vector<1x32xf32>, vector<32x2xf32>, vector<1x2xf32> -> vector<1x2xf32>
    %cst_10 = arith.constant 0.000000e+00 : f32
    %8 = vector.broadcast %cst_10 : f32 to vector<1x2xf32>
    %9 = arith.maximumf %7, %8 : vector<1x2xf32>
    %c0_11 = arith.constant 0 : index
    %c0_12 = arith.constant 0 : index
    %10 = vector.load %arg3[%c0_11, %c0_12] : memref<2x32xf32, #tpu.memory_space<vmem>>, vector<2x32xf32>
    %cst_13 = arith.constant dense<0.000000e+00> : vector<1x32xf32>
    %11 = tpu.matmul %9, %10, %cst_13 {dimension_numbers = #tpu.dot_dimension_numbers<[1], [0], [0], [1], [0, 0, 1, 1], [], []>} : vector<1x2xf32>, vector<2x32xf32>, vector<1x32xf32> -> vector<1x32xf32>
    %c0_14 = arith.constant 0 : index
    %c0_15 = arith.constant 0 : index
    %12 = vector.load %arg2[%c0_14, %c0_15] : memref<32x2xf32, #tpu.memory_space<vmem>>, vector<32x2xf32>
    %cst_16 = arith.constant dense<0.000000e+00> : vector<1x2xf32>
    %13 = tpu.matmul %5, %12, %cst_16 {dimension_numbers = #tpu.dot_dimension_numbers<[1], [0], [0], [1], [0, 0, 1, 1], [], []>} : vector<1x32xf32>, vector<32x2xf32>, vector<1x2xf32> -> vector<1x2xf32>
    %cst_17 = arith.constant 0.000000e+00 : f32
    %14 = vector.broadcast %cst_17 : f32 to vector<1x2xf32>
    %15 = arith.maximumf %13, %14 : vector<1x2xf32>
    %c0_18 = arith.constant 0 : index
    %c0_19 = arith.constant 0 : index
    %16 = vector.load %arg3[%c0_18, %c0_19] : memref<2x32xf32, #tpu.memory_space<vmem>>, vector<2x32xf32>
    %cst_20 = arith.constant dense<0.000000e+00> : vector<1x32xf32>
    %17 = tpu.matmul %15, %16, %cst_20 {dimension_numbers = #tpu.dot_dimension_numbers<[1], [0], [0], [1], [0, 0, 1, 1], [], []>} : vector<1x2xf32>, vector<2x32xf32>, vector<1x32xf32> -> vector<1x32xf32>
    %18 = arith.addf %11, %17 : vector<1x32xf32>
    %19 = arith.negf %18 : vector<1x32xf32>
    %20 = math.exp %19 : vector<1x32xf32>
    %cst_21 = arith.constant 1.000000e+00 : f32
    %21 = vector.broadcast %cst_21 : f32 to vector<1x32xf32>
    %22 = arith.addf %21, %20 : vector<1x32xf32>
    %23 = arith.divf %21, %22 : vector<1x32xf32>
    %c0_22 = arith.constant 0 : index
    %c0_23 = arith.constant 0 : index
    %c0_24 = arith.constant 0 : index
    %24 = vector.load %arg1[%c0_22, %c0_23, %c0_24] : memref<1x32x256xf32, #tpu.memory_space<vmem>>, vector<1x32x256xf32>
    %25 = vector.shape_cast %23 : vector<1x32xf32> to vector<1x32x1xf32>
    %26 = vector.broadcast %25 : vector<1x32x1xf32> to vector<1x32x256xf32>
    %27 = arith.mulf %24, %26 : vector<1x32x256xf32>
    %c0_25 = arith.constant 0 : index
    %c0_26 = arith.constant 0 : index
    %c0_27 = arith.constant 0 : index
    %28 = vector.load %arg4[%c0_25, %c0_26, %c0_27] : memref<1x32x256xf32, #tpu.memory_space<vmem>>, vector<1x32x256xf32>
    tpu.vector_store %arg4[%c0_25, %c0_26, %c0_27], %27 {strides = array<i32>} : memref<1x32x256xf32, #tpu.memory_space<vmem>>, vector<1x32x256xf32>,
    return
  }
  func.func @transform_0(%arg0: i32) -> (i32, i32, i32) {
    %c0_i32 = arith.constant 0 : i32
    %c0_i32_0 = arith.constant 0 : i32
    %c0_i32_1 = arith.constant 0 : i32
    return %arg0, %c0_i32, %c0_i32_0 : i32, i32, i32
  }
  func.func @transform_1(%arg0: i32) -> (i32, i32) {
    %c0_i32 = arith.constant 0 : i32
    %c0_i32_0 = arith.constant 0 : i32
    %c0_i32_1 = arith.constant 0 : i32
    return %c0_i32, %c0_i32_0 : i32, i32
  }
  func.func @transform_2(%arg0: i32) -> (i32, i32) {
    %c0_i32 = arith.constant 0 : i32
    %c0_i32_0 = arith.constant 0 : i32
    %c0_i32_1 = arith.constant 0 : i32
    return %c0_i32, %c0_i32_0 : i32, i32
  }
  func.func @transform_3(%arg0: i32) -> (i32, i32, i32) {
    %c0_i32 = arith.constant 0 : i32
    %c0_i32_0 = arith.constant 0 : i32
    %c0_i32_1 = arith.constant 0 : i32
    return %arg0, %c0_i32, %c0_i32_0 : i32, i32, i32
  }
}

</mosaic_0001>

<llo_original>
// kernel: tpu_custom_call.1
$region0: #{tpu_custom_call.1}
  #allocation0 [shape = 'u32[]', space=smem, size = 0x4, offset = 0x4, fixed_abs, tag = 'smem constant byte address 0x4 - core index']
  #allocation1 [shape = 'u32[144,128]{1,0:T(1,128)}', space=vmem, size = 0x12000, scoped, tag = 'internal scratch']
  %s0 = inlined_call_operand.hbm [shape: f32[2,32,256], index: 0, kind: input, shape index: {}]
  %s1 = inlined_call_operand.vmem [shape: f32[32,2], index: 1, kind: input, shape index: {}]
  %s2 = inlined_call_operand.vmem [shape: f32[2,32], index: 2, kind: input, shape index: {}]
  %s3 = inlined_call_operand.hbm [shape: f32[2,32,256], index: 3, kind: output, shape index: {}]
  %s4 = sld [smem:[#allocation0]]
  $region49: #{tpu_custom_call.1} parent=0
    _
  %s6 = ssub.s32 1, %s4
  %s7 = scalar_select 0, %s6, %s4
  $region1: #{tpu_custom_call.1} parent=0
    #allocation2 [shape = 'u8[65536]{0}', space=vmem, size = 0x10000, scoped, tag = 'input window, operand 0']
    #allocation3 [shape = 's32[2]{0}', space=sflag, size = 0x8, scoped, tag = 'scoped memory for tpu_custom_call.1']
    #allocation4 [shape = 's32[2]{0}', space=sflag, size = 0x8, scoped, tag = 'scoped memory for tpu_custom_call.1']
    #allocation5 [shape = 'u8[65536]{0}', space=vmem, size = 0x10000, scoped, tag = 'output window, operand 0']
    %8 = vsyncpa [#allocation3], 0
    %s9 = scalar_lea.sflag [#allocation3], 1
    %10 = vsyncpa %s9, 0
    %11 = vsyncpa [#allocation4], 0
    %s12 = scalar_lea.sflag [#allocation4], 1
    %13 = vsyncpa %s12, 0
    loop: start=0, step=1, limit=4
    $region2: #{tpu_custom_call.1} parent=1 // loop_pre_header
      _
    $region3: #{tpu_custom_call.1} parent=1 // loop_header
      %s15 = sphi 0, %s19
      %p16 = scmp.ge.s32.totalorder %s15, 4
      %s25 = sphi 0, %s27
      %s28 = sphi 0, %s25
      %s29 = sphi 0, %s28
      %s45 = sphi 0, %s29
      %s49 = sphi 0, %s49
      %s51 = sphi 0, %s49
      %s52 = sphi 0, %s51
      %s66 = sphi 0, %s52
      %s70 = sphi 0, %s70
      %s72 = sphi 0, %s70
      %s73 = sphi 0, %s72
      %s87 = sphi 0, %s73
      %s93 = sphi 0, %s95
      %s96 = sphi 0, %s93
      %s97 = sphi 0, %s96
      %s113 = sphi 0, %s97
    $region4: #{tpu_custom_call.1} parent=1 // loop_header_branch
      %18 = sbr.rel (%p16) target = $region8
    $region5: #{tpu_custom_call.1} parent=1 // loop_body
      %s20 = ssub.s32 %s15, 1
      %s21 = ssub.s32 %s15, 2
      %s22 = sadd.s32 %s15, 1
      %s23 = ssub.s32 %s15, %s22
      %p24 = scmp.eq.s32.totalorder %s23, 0
      %s26 = sadd.s32 %s25, 1
      %s27 = scalar_select %p24, %s25, %s26
      %p30 = pneg %p24
      %p31 = scmp.eq.s32.totalorder %s15, 1
      %p32 = por %p30, %p31
      %p33 = scmp.ne.s32.totalorder %s25, %s28
      %p34 = scmp.eq.s32.totalorder %s15, 0
      %p35 = por %p33, %p34
      %p36 = scmp.ne.s32.totalorder %s25, %s28
      %p37 = scmp.eq.s32.totalorder %s20, 1
      %p38 = por %p36, %p37
      %p39 = scmp.ne.s32.totalorder %s28, %s29
      %p40 = scmp.eq.s32.totalorder %s20, 0
      %p41 = por %p39, %p40
      %p42 = scmp.ne.s32.totalorder %s28, %s29
      %p43 = scmp.eq.s32.totalorder %s21, 1
      %p44 = por %p42, %p43
      %p46 = scmp.ne.s32.totalorder %s29, %s45
      %p47 = scmp.eq.s32.totalorder %s21, 0
      %p48 = por %p46, %p47
      %s50 = sadd.s32 %s49, 1
      %p53 = scmp.eq.s32.totalorder %s15, 1
      %p54 = scmp.ne.s32.totalorder %s49, %s51
      %p55 = scmp.eq.s32.totalorder %s15, 0
      %p56 = por %p54, %p55
      %p57 = scmp.ne.s32.totalorder %s49, %s51
      %p58 = scmp.eq.s32.totalorder %s20, 1
      %p59 = por %p57, %p58
      %p60 = scmp.ne.s32.totalorder %s51, %s52
      %p61 = scmp.eq.s32.totalorder %s20, 0
      %p62 = por %p60, %p61
      %p63 = scmp.ne.s32.totalorder %s51, %s52
      %p64 = scmp.eq.s32.totalorder %s21, 1
      %p65 = por %p63, %p64
      %p67 = scmp.ne.s32.totalorder %s52, %s66
      %p68 = scmp.eq.s32.totalorder %s21, 0
      %p69 = por %p67, %p68
      %s71 = sadd.s32 %s70, 1
      %p74 = scmp.eq.s32.totalorder %s15, 1
      %p75 = scmp.ne.s32.totalorder %s70, %s72
      %p76 = scmp.eq.s32.totalorder %s15, 0
      %p77 = por %p75, %p76
      %p78 = scmp.ne.s32.totalorder %s70, %s72
      %p79 = scmp.eq.s32.totalorder %s20, 1
      %p80 = por %p78, %p79
      %p81 = scmp.ne.s32.totalorder %s72, %s73
      %p82 = scmp.eq.s32.totalorder %s20, 0
      %p83 = por %p81, %p82
      %p84 = scmp.ne.s32.totalorder %s72, %s73
      %p85 = scmp.eq.s32.totalorder %s21, 1
      %p86 = por %p84, %p85
      %p88 = scmp.ne.s32.totalorder %s73, %s87
      %p89 = scmp.eq.s32.totalorder %s21, 0
      %p90 = por %p88, %p89
      %s91 = ssub.s32 %s15, %s22
      %p92 = scmp.eq.s32.totalorder %s91, 0
      %s94 = sadd.s32 %s93, 1
      %s95 = scalar_select %p92, %s93, %s94
      %p98 = pneg %p92
      %p99 = scmp.eq.s32.totalorder %s15, 1
      %p100 = por %p98, %p99
      %p101 = scmp.ne.s32.totalorder %s93, %s96
      %p102 = scmp.eq.s32.totalorder %s15, 0
      %p103 = por %p101, %p102
      %p104 = scmp.ne.s32.totalorder %s93, %s96
      %p105 = scmp.eq.s32.totalorder %s20, 1
      %p106 = por %p104, %p105
      %p107 = scmp.ne.s32.totalorder %s96, %s97
      %p108 = scmp.eq.s32.totalorder %s20, 0
      %p109 = por %p107, %p108
      %p110 = scmp.ne.s32.totalorder %s96, %s97
      %p111 = scmp.eq.s32.totalorder %s21, 1
      %p112 = por %p110, %p111
      %p114 = scmp.ne.s32.totalorder %s97, %s113
      %p115 = scmp.eq.s32.totalorder %s21, 0
      %p116 = por %p114, %p115
      %p117 = scmp.le.s32.totalorder 1, %s15
      %p118 = scmp.lt.s32.totalorder %s15, 3
      %p119 = pnand %p117, %p118
      %p120 = pneg %p119
      // Predicated region
      $region9: #{tpu_custom_call.1} parent=5 // pred_check
        _
      $region10: #{tpu_custom_call.1} parent=5 // pred_check_branch
        %122 = sbr.rel (%p119) target = $region12
      $region11: #{tpu_custom_call.1} parent=5 // pred_region
        %s123 = ssub.s32 %s15, 1
        // Predicated region
        $region13: #{tpu_custom_call.1} parent=11 // pred_check
          %p124 = pneg %p62
        $region14: #{tpu_custom_call.1} parent=11 // pred_check_branch
          %126 = sbr.rel (%p124) target = $region16
        $region15: #{tpu_custom_call.1} parent=11 // pred_region
          _
        $region16: #{tpu_custom_call.1} parent=11 // pred_fallthru
          _
        // Predicated region
        $region17: #{tpu_custom_call.1} parent=11 // pred_check
          %p127 = pneg %p83
        $region18: #{tpu_custom_call.1} parent=11 // pred_check_branch
          %129 = sbr.rel (%p127) target = $region20
        $region19: #{tpu_custom_call.1} parent=11 // pred_region
          _
        $region20: #{tpu_custom_call.1} parent=11 // pred_fallthru
          _
      $region12: #{tpu_custom_call.1} parent=5 // pred_fallthru
        _
      %p130 = scmp.lt.s32.totalorder %s15, 2
      // Predicated region
      $region21: #{tpu_custom_call.1} parent=5 // pred_check
        %p131 = pneg %p130
      $region22: #{tpu_custom_call.1} parent=5 // pred_check_branch
        %133 = sbr.rel (%p131) target = $region24
      $region23: #{tpu_custom_call.1} parent=5 // pred_region
        // Predicated region
        $region25: #{tpu_custom_call.1} parent=23 // pred_check
          %p134 = pneg %p35
        $region26: #{tpu_custom_call.1} parent=23 // pred_check_branch
          %136 = sbr.rel (%p134) target = $region28
        $region27: #{tpu_custom_call.1} parent=23 // pred_region
          %s137 = sand.u32 %s25, 1
          %s138 = scalar_lea.sflag [#allocation3], %s137
          %s139 = sand.u32 %s25, 1
          %s140 = smul.addr %s139, 64
          %s141 = scalar_lea.vmem [#allocation2], %s140
          %s143 = ssub.s32 1024, 1024
          %144 = vsyncadd %s138, %s143
          %s145 = smul.addr %s15, 8
          %s146 = smul.addr %s145, 128
          %s147 = scalar_lea.hbm %s0, %s146
          %s148 = sshll.u32 %s141, 4
          %s149 = int_to_ptr.vmem [resolvable:$true] %s148
          %154 = dma.hbm_to_vmem [thread:$0]  %s147, 1024, %s149, %s138, 256, 256, 16
        $region28: #{tpu_custom_call.1} parent=23 // pred_fallthru
          _
      $region24: #{tpu_custom_call.1} parent=5 // pred_fallthru
        _
      %p155 = scmp.le.s32.totalorder 1, %s15
      %p156 = scmp.lt.s32.totalorder %s15, 3
      %p157 = pnand %p155, %p156
      %p158 = pneg %p157
      // Predicated region
      $region29: #{tpu_custom_call.1} parent=5 // pred_check
        _
      $region30: #{tpu_custom_call.1} parent=5 // pred_check_branch
        %160 = sbr.rel (%p157) target = $region32
      $region31: #{tpu_custom_call.1} parent=5 // pred_region
        %s161 = ssub.s32 %s15, 1
        %s162 = sand.u32 %s28, 1
        %s163 = scalar_lea.sflag [#allocation3], %s162
        %s164 = sand.u32 %s28, 1
        %s165 = smul.addr %s164, 64
        %s166 = scalar_lea.vmem [#allocation2], %s165
        // Predicated region
        $region33: #{tpu_custom_call.1} parent=31 // pred_check
          %p167 = pneg %p41
        $region34: #{tpu_custom_call.1} parent=31 // pred_check_branch
          %169 = sbr.rel (%p167) target = $region36
        $region35: #{tpu_custom_call.1} parent=31 // pred_region
          %170 = dma.done %s163, 1024
        $region36: #{tpu_custom_call.1} parent=31 // pred_fallthru
          _
        %s171 = sand.u32 %s28, 1
        %s172 = scalar_lea.sflag [#allocation3], %s171
        %s173 = sand.u32 %s28, 1
        %s174 = smul.addr %s173, 64
        %s175 = scalar_lea.vmem [#allocation2], %s174
        %p176 = pneg %p41
        %p177 = pneg %p38
        %p178 = pneg %p62
        %p179 = pneg %p59
        %p180 = pneg %p83
        %p181 = pneg %p80
        %p182 = pneg %p109
        %p183 = pneg %p106
        %s184 = sand.u32 %s96, 1
        %s185 = scalar_lea.sflag [#allocation4], %s184
        %s186 = sand.u32 %s96, 1
        %s187 = smul.addr %s186, 64
        %s188 = scalar_lea.vmem [#allocation5], %s187
        %v189 = vld [vmem:[%s166] sm:$0xff]
        %v190 = vld [vmem:[%s166 + $0x8] sm:$0xff]
        %v191 = vld [vmem:[%s166 + $0x10] sm:$0xff]
        %v192 = vld [vmem:[%s166 + $0x18] sm:$0xff]
        %v193 = vld [vmem:[%s166 + $0x20] sm:$0xff]
        %v194 = vld [vmem:[%s166 + $0x28] sm:$0xff]
        %v195 = vld [vmem:[%s166 + $0x30] sm:$0xff]
        %v196 = vld [vmem:[%s166 + $0x38] sm:$0xff]
        %v197 = vmax.f32 %v189, %v190
        %198 = vmax.xlane.f32.xlu0 %v197
        %v199 = vpop.xlane.xlu0 %198
        %v200 = vmax.f32 %v191, %v192
        %201 = vmax.xlane.f32.xlu0 %v200
        %v202 = vpop.xlane.xlu0 %201
        %v203 = vmax.f32 %v193, %v194
        %204 = vmax.xlane.f32.xlu0 %v203
        %v205 = vpop.xlane.xlu0 %204
        %v206 = vmax.f32 %v195, %v196
        %207 = vmax.xlane.f32.xlu0 %v206
        %v208 = vpop.xlane.xlu0 %207
        %v209 = vadd.f32 %v189, %v190
        %210 = vadd.xlane.f32.xlu0 %v209
        %v211 = vpop.xlane.xlu0 %210
        %v212 = vadd.f32 %v191, %v192
        %213 = vadd.xlane.f32.xlu0 %v212
        %v214 = vpop.xlane.xlu0 %213
        %v215 = vadd.f32 %v193, %v194
        %216 = vadd.xlane.f32.xlu0 %v215
        %v217 = vpop.xlane.xlu0 %216
        %v218 = vadd.f32 %v195, %v196
        %219 = vadd.xlane.f32.xlu0 %v218
        %v220 = vpop.xlane.xlu0 %219
        %v221 = vrcp.pop 256.0
        %v222 = vmul.f32 %v211, %v221
        %v223 = vmul.f32 %v214, %v221
        %v224 = vmul.f32 %v217, %v221
        %v225 = vmul.f32 %v220, %v221
        %v226 = vld [vmem:[%s1] sm:$0xff]
        %v227 = vld [vmem:[%s1 + $0x8] sm:$0xff]
        %v228 = vld [vmem:[%s1 + $0x10] sm:$0xff]
        %v229 = vld [vmem:[%s1 + $0x18] sm:$0xff]
        %v234 = vlaneseq
        %v235 = vand.u32 %v234, 127
        %v236 = vlaneseq
        %v237 = vshrl.u32 %v236, 7
        %v238 = vsub.s32 %v235, %v237
        %v239 = vrot.slane %v199, %v238
        %v240 = vadd.s32 %v235, 4294967288
        %v241 = vlaneseq
        %v242 = vshrl.u32 %v241, 7
        %v243 = vsub.s32 %v240, %v242
        %v244 = vrot.slane %v202, %v243
        %vm245 = vcmask 130112
        %v246 = vsel %vm245, %v244, %v239
        %v247 = vadd.s32 %v235, 4294967280
        %v248 = vlaneseq
        %v249 = vshrl.u32 %v248, 7
        %v250 = vsub.s32 %v247, %v249
        %v251 = vrot.slane %v205, %v250
        %vm252 = vcmask 195712
        %v253 = vsel %vm252, %v251, %v246
        %v254 = vadd.s32 %v235, 4294967272
        %v255 = vlaneseq
        %v256 = vshrl.u32 %v255, 7
        %v257 = vsub.s32 %v254, %v256
        %v258 = vrot.slane %v208, %v257
        %vm259 = vcmask 261312
        %v260 = vsel %vm259, %v258, %v253
        %vm261 = vcmask 261120
        %v262 = vsel %vm261, %v260, 0
        %264 = vmatprep.subr.mxu0 0.0
        %265 = vmatpush1.msra.mxu0 %v226
        %266 = vmatprep.subr.mxu0 0.0
        %267 = vmatpush1.msra.mxu0 %v227
        %268 = vmatprep.subr.mxu0 0.0
        %269 = vmatpush1.msra.mxu0 %v228
        %270 = vmatprep.subr.mxu0 0.0
        %271 = vmatpush1.msra.mxu0 %v229
        %272 = vmatprep.subr.mxu0 0.0
        %273 = vmatpush1.msra.mxu0 0.0
        %274 = vmatprep.subr.mxu0 0.0
        %275 = vmatpush1.msra.mxu0 0.0
        %276 = vmatprep.subr.mxu0 0.0
        %277 = vmatpush1.msra.mxu0 0.0
        %278 = vmatprep.subr.mxu0 0.0
        %279 = vmatpush1.msra.mxu0 0.0
        %280 = vmatprep.subr.mxu0 0.0
        %281 = vmatpush1.msra.mxu0 0.0
        %282 = vmatprep.subr.mxu0 0.0
        %283 = vmatpush1.msra.mxu0 0.0
        %284 = vmatprep.subr.mxu0 0.0
        %285 = vmatpush1.msra.mxu0 0.0
        %286 = vmatprep.subr.mxu0 0.0
        %287 = vmatpush1.msra.mxu0 0.0
        %288 = vmatprep.subr.mxu0 0.0
        %289 = vmatpush1.msra.mxu0 0.0
        %290 = vmatprep.subr.mxu0 0.0
        %291 = vmatpush1.msra.mxu0 0.0
        %292 = vmatprep.subr.mxu0 0.0
        %293 = vmatpush1.msra.mxu0 0.0
        %294 = vmatprep.subr.mxu0 0.0
        %295 = vmatpush1.msra.mxu0 0.0
        %296 = vmatprep.subr.mxu0 0.0
        %297 = vmatpush1.msra.mxu0 0.0
        %298 = vmatprep.subr.mxu0 0.0
        %299 = vmatpush1.msra.mxu0 0.0
        %300 = vmatprep.subr.mxu0 0.0
        %301 = vmatpush1.msra.mxu0 0.0
        %302 = vmatprep.subr.mxu0 0.0
        %303 = vmatpush1.msra.mxu0 0.0
        %304 = vmatprep.subr.mxu0 0.0
        %305 = vmatpush1.msra.mxu0 0.0
        %306 = vmatprep.subr.mxu0 0.0
        %307 = vmatpush1.msra.mxu0 0.0
        %308 = vmatprep.subr.mxu0 0.0
        %309 = vmatpush1.msra.mxu0 0.0
        %310 = vmatprep.subr.mxu0 0.0
        %311 = vmatpush1.msra.mxu0 0.0
        %312 = vmatprep.subr.mxu0 0.0
        %313 = vmatpush1.msra.mxu0 0.0
        %314 = vmatprep.subr.mxu0 0.0
        %315 = vmatpush1.msra.mxu0 0.0
        %316 = vmatprep.subr.mxu0 0.0
        %317 = vmatpush1.msra.mxu0 0.0
        %318 = vmatprep.subr.mxu0 0.0
        %319 = vmatpush1.msra.mxu0 0.0
        %320 = vmatprep.subr.mxu0 0.0
        %321 = vmatpush1.msra.mxu0 0.0
        %322 = vmatprep.subr.mxu0 0.0
        %323 = vmatpush1.msra.mxu0 0.0
        %324 = vmatprep.subr.mxu0 0.0
        %325 = vmatpush1.msra.mxu0 0.0
        %326 = vmatprep.subr.mxu0 0.0
        %327 = vmatpush1.msra.mxu0 0.0
        %328 = vmatprep.mubr.f32.mxu0 0.0
        %329 = vmatmul.mubr.f32.gmra.mrb[0].mxu0 %v262
        %v330 = vpop.f32.mrb[0].mxu0
        %v331 = vadd.f32 0.0, %v330
        %v332 = vpop.f32.mrb[0].mxu0
        %333 = vdwg.mxu0
        %v334 = vmax.f32 %v331, 0.0
        %v335 = vld [vmem:[%s2] sm:$0x3]
        %v340 = vlaneseq
        %v341 = vshrl.u32 %v340, 7
        %v342 = vsub.s32 %v235, %v341
        %v343 = vrot.slane %v222, %v342
        %v344 = vlaneseq
        %v345 = vshrl.u32 %v344, 7
        %v346 = vsub.s32 %v240, %v345
        %v347 = vrot.slane %v223, %v346
        %v348 = vsel %vm245, %v347, %v343
        %v349 = vlaneseq
        %v350 = vshrl.u32 %v349, 7
        %v351 = vsub.s32 %v247, %v350
        %v352 = vrot.slane %v224, %v351
        %v353 = vsel %vm252, %v352, %v348
        %v354 = vlaneseq
        %v355 = vshrl.u32 %v354, 7
        %v356 = vsub.s32 %v254, %v355
        %v357 = vrot.slane %v225, %v356
        %v358 = vsel %vm259, %v357, %v353
        %v359 = vsel %vm261, %v358, 0
        %361 = vmatprep.subr.mxu0 0.0
        %362 = vmatpush1.msra.mxu0 %v226
        %363 = vmatprep.subr.mxu0 0.0
        %364 = vmatpush1.msra.mxu0 %v227
        %365 = vmatprep.subr.mxu0 0.0
        %366 = vmatpush1.msra.mxu0 %v228
        %367 = vmatprep.subr.mxu0 0.0
        %368 = vmatpush1.msra.mxu0 %v229
        %369 = vmatprep.subr.mxu0 0.0
        %370 = vmatpush1.msra.mxu0 0.0
        %371 = vmatprep.subr.mxu0 0.0
        %372 = vmatpush1.msra.mxu0 0.0
        %373 = vmatprep.subr.mxu0 0.0
        %374 = vmatpush1.msra.mxu0 0.0
        %375 = vmatprep.subr.mxu0 0.0
        %376 = vmatpush1.msra.mxu0 0.0
        %377 = vmatprep.subr.mxu0 0.0
        %378 = vmatpush1.msra.mxu0 0.0
        %379 = vmatprep.subr.mxu0 0.0
        %380 = vmatpush1.msra.mxu0 0.0
        %381 = vmatprep.subr.mxu0 0.0
        %382 = vmatpush1.msra.mxu0 0.0
        %383 = vmatprep.subr.mxu0 0.0
        %384 = vmatpush1.msra.mxu0 0.0
        %385 = vmatprep.subr.mxu0 0.0
        %386 = vmatpush1.msra.mxu0 0.0
        %387 = vmatprep.subr.mxu0 0.0
        %388 = vmatpush1.msra.mxu0 0.0
        %389 = vmatprep.subr.mxu0 0.0
        %390 = vmatpush1.msra.mxu0 0.0
        %391 = vmatprep.subr.mxu0 0.0
        %392 = vmatpush1.msra.mxu0 0.0
        %393 = vmatprep.subr.mxu0 0.0
        %394 = vmatpush1.msra.mxu0 0.0
        %395 = vmatprep.subr.mxu0 0.0
        %396 = vmatpush1.msra.mxu0 0.0
        %397 = vmatprep.subr.mxu0 0.0
        %398 = vmatpush1.msra.mxu0 0.0
        %399 = vmatprep.subr.mxu0 0.0
        %400 = vmatpush1.msra.mxu0 0.0
        %401 = vmatprep.subr.mxu0 0.0
        %402 = vmatpush1.msra.mxu0 0.0
        %403 = vmatprep.subr.mxu0 0.0
        %404 = vmatpush1.msra.mxu0 0.0
        %405 = vmatprep.subr.mxu0 0.0
        %406 = vmatpush1.msra.mxu0 0.0
        %407 = vmatprep.subr.mxu0 0.0
        %408 = vmatpush1.msra.mxu0 0.0
        %409 = vmatprep.subr.mxu0 0.0
        %410 = vmatpush1.msra.mxu0 0.0
        %411 = vmatprep.subr.mxu0 0.0
        %412 = vmatpush1.msra.mxu0 0.0
        %413 = vmatprep.subr.mxu0 0.0
        %414 = vmatpush1.msra.mxu0 0.0
        %415 = vmatprep.subr.mxu0 0.0
        %416 = vmatpush1.msra.mxu0 0.0
        %417 = vmatprep.subr.mxu0 0.0
        %418 = vmatpush1.msra.mxu0 0.0
        %419 = vmatprep.subr.mxu0 0.0
        %420 = vmatpush1.msra.mxu0 0.0
        %421 = vmatprep.subr.mxu0 0.0
        %422 = vmatpush1.msra.mxu0 0.0
        %423 = vmatprep.subr.mxu0 0.0
        %424 = vmatpush1.msra.mxu0 0.0
        %425 = vmatprep.mubr.f32.mxu0 0.0
        %426 = vmatmul.mubr.f32.gmra.mrb[0].mxu0 %v359
        %v427 = vpop.f32.mrb[0].mxu0
        %v428 = vadd.f32 0.0, %v427
        %v429 = vpop.f32.mrb[0].mxu0
        %430 = vdwg.mxu0
        %v431 = vmax.f32 %v428, 0.0
        %vm432 = vcmask 15360
        %v434 = vsel %vm432, %v431, 0
        %vm436 = vcmask 1041408
        %v438 = vsel %vm436, %v335, 0
        %440 = vmatprep.subr.mxu0 0.0
        %441 = vmatpush1.msra.mxu0 %v438
        %442 = vmatprep.subr.mxu0 0.0
        %443 = vmatpush1.msra.mxu0 0.0
        %444 = vmatprep.subr.mxu0 0.0
        %445 = vmatpush1.msra.mxu0 0.0
        %446 = vmatprep.subr.mxu0 0.0
        %447 = vmatpush1.msra.mxu0 0.0
        %448 = vmatprep.subr.mxu0 0.0
        %449 = vmatpush1.msra.mxu0 0.0
        %450 = vmatprep.subr.mxu0 0.0
        %451 = vmatpush1.msra.mxu0 0.0
        %452 = vmatprep.subr.mxu0 0.0
        %453 = vmatpush1.msra.mxu0 0.0
        %454 = vmatprep.subr.mxu0 0.0
        %455 = vmatpush1.msra.mxu0 0.0
        %456 = vmatprep.subr.mxu0 0.0
        %457 = vmatpush1.msra.mxu0 0.0
        %458 = vmatprep.subr.mxu0 0.0
        %459 = vmatpush1.msra.mxu0 0.0
        %460 = vmatprep.subr.mxu0 0.0
        %461 = vmatpush1.msra.mxu0 0.0
        %462 = vmatprep.subr.mxu0 0.0
        %463 = vmatpush1.msra.mxu0 0.0
        %464 = vmatprep.subr.mxu0 0.0
        %465 = vmatpush1.msra.mxu0 0.0
        %466 = vmatprep.subr.mxu0 0.0
        %467 = vmatpush1.msra.mxu0 0.0
        %468 = vmatprep.subr.mxu0 0.0
        %469 = vmatpush1.msra.mxu0 0.0
        %470 = vmatprep.subr.mxu0 0.0
        %471 = vmatpush1.msra.mxu0 0.0
        %472 = vmatprep.subr.mxu0 0.0
        %473 = vmatpush1.msra.mxu0 0.0
        %474 = vmatprep.subr.mxu0 0.0
        %475 = vmatpush1.msra.mxu0 0.0
        %476 = vmatprep.subr.mxu0 0.0
        %477 = vmatpush1.msra.mxu0 0.0
        %478 = vmatprep.subr.mxu0 0.0
        %479 = vmatpush1.msra.mxu0 0.0
        %480 = vmatprep.subr.mxu0 0.0
        %481 = vmatpush1.msra.mxu0 0.0
        %482 = vmatprep.subr.mxu0 0.0
        %483 = vmatpush1.msra.mxu0 0.0
        %484 = vmatprep.subr.mxu0 0.0
        %485 = vmatpush1.msra.mxu0 0.0
        %486 = vmatprep.subr.mxu0 0.0
        %487 = vmatpush1.msra.mxu0 0.0
        %488 = vmatprep.subr.mxu0 0.0
        %489 = vmatpush1.msra.mxu0 0.0
        %490 = vmatprep.subr.mxu0 0.0
        %491 = vmatpush1.msra.mxu0 0.0
        %492 = vmatprep.subr.mxu0 0.0
        %493 = vmatpush1.msra.mxu0 0.0
        %494 = vmatprep.subr.mxu0 0.0
        %495 = vmatpush1.msra.mxu0 0.0
        %496 = vmatprep.subr.mxu0 0.0
        %497 = vmatpush1.msra.mxu0 0.0
        %498 = vmatprep.subr.mxu0 0.0
        %499 = vmatpush1.msra.mxu0 0.0
        %500 = vmatprep.subr.mxu0 0.0
        %501 = vmatpush1.msra.mxu0 0.0
        %502 = vmatprep.subr.mxu0 0.0
        %503 = vmatpush1.msra.mxu0 0.0
        %504 = vmatprep.mubr.f32.mxu0 0.0
        %505 = vmatmul.mubr.f32.gmra.mrb[0].mxu0 %v434
        %v506 = vpop.f32.mrb[0].mxu0
        %v507 = vadd.f32 0.0, %v506
        %v508 = vpop.f32.mrb[0].mxu0
        %509 = vdwg.mxu0
        %v511 = vsel %vm432, %v334, 0
        %513 = vmatprep.subr.mxu0 0.0
        %514 = vmatpush1.msra.mxu0 %v438
        %515 = vmatprep.subr.mxu0 0.0
        %516 = vmatpush1.msra.mxu0 0.0
        %517 = vmatprep.subr.mxu0 0.0
        %518 = vmatpush1.msra.mxu0 0.0
        %519 = vmatprep.subr.mxu0 0.0
        %520 = vmatpush1.msra.mxu0 0.0
        %521 = vmatprep.subr.mxu0 0.0
        %522 = vmatpush1.msra.mxu0 0.0
        %523 = vmatprep.subr.mxu0 0.0
        %524 = vmatpush1.msra.mxu0 0.0
        %525 = vmatprep.subr.mxu0 0.0
        %526 = vmatpush1.msra.mxu0 0.0
        %527 = vmatprep.subr.mxu0 0.0
        %528 = vmatpush1.msra.mxu0 0.0
        %529 = vmatprep.subr.mxu0 0.0
        %530 = vmatpush1.msra.mxu0 0.0
        %531 = vmatprep.subr.mxu0 0.0
        %532 = vmatpush1.msra.mxu0 0.0
        %533 = vmatprep.subr.mxu0 0.0
        %534 = vmatpush1.msra.mxu0 0.0
        %535 = vmatprep.subr.mxu0 0.0
        %536 = vmatpush1.msra.mxu0 0.0
        %537 = vmatprep.subr.mxu0 0.0
        %538 = vmatpush1.msra.mxu0 0.0
        %539 = vmatprep.subr.mxu0 0.0
        %540 = vmatpush1.msra.mxu0 0.0
        %541 = vmatprep.subr.mxu0 0.0
        %542 = vmatpush1.msra.mxu0 0.0
        %543 = vmatprep.subr.mxu0 0.0
        %544 = vmatpush1.msra.mxu0 0.0
        %545 = vmatprep.subr.mxu0 0.0
        %546 = vmatpush1.msra.mxu0 0.0
        %547 = vmatprep.subr.mxu0 0.0
        %548 = vmatpush1.msra.mxu0 0.0
        %549 = vmatprep.subr.mxu0 0.0
        %550 = vmatpush1.msra.mxu0 0.0
        %551 = vmatprep.subr.mxu0 0.0
        %552 = vmatpush1.msra.mxu0 0.0
        %553 = vmatprep.subr.mxu0 0.0
        %554 = vmatpush1.msra.mxu0 0.0
        %555 = vmatprep.subr.mxu0 0.0
        %556 = vmatpush1.msra.mxu0 0.0
        %557 = vmatprep.subr.mxu0 0.0
        %558 = vmatpush1.msra.mxu0 0.0
        %559 = vmatprep.subr.mxu0 0.0
        %560 = vmatpush1.msra.mxu0 0.0
        %561 = vmatprep.subr.mxu0 0.0
        %562 = vmatpush1.msra.mxu0 0.0
        %563 = vmatprep.subr.mxu0 0.0
        %564 = vmatpush1.msra.mxu0 0.0
        %565 = vmatprep.subr.mxu0 0.0
        %566 = vmatpush1.msra.mxu0 0.0
        %567 = vmatprep.subr.mxu0 0.0
        %568 = vmatpush1.msra.mxu0 0.0
        %569 = vmatprep.subr.mxu0 0.0
        %570 = vmatpush1.msra.mxu0 0.0
        %571 = vmatprep.subr.mxu0 0.0
        %572 = vmatpush1.msra.mxu0 0.0
        %573 = vmatprep.subr.mxu0 0.0
        %574 = vmatpush1.msra.mxu0 0.0
        %575 = vmatprep.subr.mxu0 0.0
        %576 = vmatpush1.msra.mxu0 0.0
        %577 = vmatprep.mubr.f32.mxu0 0.0
        %578 = vmatmul.mubr.f32.gmra.mrb[0].mxu0 %v511
        %v579 = vpop.f32.mrb[0].mxu0
        %v580 = vadd.f32 %v507, %v579
        %v581 = vpop.f32.mrb[0].mxu0
        %582 = vdwg.mxu0
        %v583 = vxor.u32 %v580, 2147483648
        %v584 = vmul.f32 %v583, 1.442695
        %v585 = vpow.pop %v584
        %v586 = vadd.f32 %v585, 1.0
        %v587 = vrcp.pop %v586
        %v588 = vmul.f32 1.0, %v587
        %v589 = vlaneseq
        %v590 = vshrl.u32 %v589, 7
        %v591 = vsub.s32 0, %v590
        %v592 = vrot.slane %v588, %v591
        %594 = vbcast.lane.b32.xlu0 %v592, 256
        %v595 = vpop.permute.xlu0 %594
        %s597 = sor.u32 256, 8
        %598 = vbcast.lane.b32.xlu0 %v592, %s597
        %v599 = vpop.permute.xlu0 %598
        %s601 = sor.u32 256, 16
        %602 = vbcast.lane.b32.xlu0 %v592, %s601
        %v603 = vpop.permute.xlu0 %602
        %s605 = sor.u32 256, 24
        %606 = vbcast.lane.b32.xlu0 %v592, %s605
        %v607 = vpop.permute.xlu0 %606
        %v608 = vmul.f32 %v189, %v595
        %v609 = vmul.f32 %v190, %v595
        %v610 = vmul.f32 %v191, %v599
        %v611 = vmul.f32 %v192, %v599
        %v612 = vmul.f32 %v193, %v603
        %v613 = vmul.f32 %v194, %v603
        %v614 = vmul.f32 %v195, %v607
        %v615 = vmul.f32 %v196, %v607
        %616 = vst [vmem:[%s188] sm:$0xff] %v608
        %617 = vst [vmem:[%s188 + $0x8] sm:$0xff] %v609
        %618 = vst [vmem:[%s188 + $0x10] sm:$0xff] %v610
        %619 = vst [vmem:[%s188 + $0x18] sm:$0xff] %v611
        %620 = vst [vmem:[%s188 + $0x20] sm:$0xff] %v612
        %621 = vst [vmem:[%s188 + $0x28] sm:$0xff] %v613
        %622 = vst [vmem:[%s188 + $0x30] sm:$0xff] %v614
        %623 = vst [vmem:[%s188 + $0x38] sm:$0xff] %v615
        %s624 = sand.u32 %s96, 1
        %s625 = scalar_lea.sflag [#allocation4], %s624
        %s626 = sand.u32 %s96, 1
        %s627 = smul.addr %s626, 64
        %s628 = scalar_lea.vmem [#allocation5], %s627
        // Predicated region
        $region37: #{tpu_custom_call.1} parent=31 // pred_check
          %p629 = pneg %p106
        $region38: #{tpu_custom_call.1} parent=31 // pred_check_branch
          %631 = sbr.rel (%p629) target = $region40
        $region39: #{tpu_custom_call.1} parent=31 // pred_region
          %s633 = ssub.s32 1024, 1024
          %634 = vsyncadd %s625, %s633
          %s635 = smul.addr %s20, 8
          %s636 = smul.addr %s635, 128
          %s637 = scalar_lea.hbm %s3, %s636
          %s638 = sshll.u32 %s628, 4
          %s639 = int_to_ptr.vmem [resolvable:$true] %s638
          %644 = dma.vmem_to_hbm [thread:$0]  %s639, 1024, %s637, %s625, 256, 256, 16
        $region40: #{tpu_custom_call.1} parent=31 // pred_fallthru
          _
      $region32: #{tpu_custom_call.1} parent=5 // pred_fallthru
        _
      %p645 = scmp.le.s32.totalorder 2, %s15
      // Predicated region
      $region41: #{tpu_custom_call.1} parent=5 // pred_check
        %p646 = pneg %p645
      $region42: #{tpu_custom_call.1} parent=5 // pred_check_branch
        %648 = sbr.rel (%p646) target = $region44
      $region43: #{tpu_custom_call.1} parent=5 // pred_region
        %s649 = ssub.s32 %s15, 2
        // Predicated region
        $region45: #{tpu_custom_call.1} parent=43 // pred_check
          %p650 = pneg %p112
        $region46: #{tpu_custom_call.1} parent=43 // pred_check_branch
          %652 = sbr.rel (%p650) target = $region48
        $region47: #{tpu_custom_call.1} parent=43 // pred_region
          %s653 = sand.u32 %s97, 1
          %s654 = scalar_lea.sflag [#allocation4], %s653
          %s655 = sand.u32 %s97, 1
          %s656 = smul.addr %s655, 64
          %s657 = scalar_lea.vmem [#allocation5], %s656
          %658 = dma.done %s654, 1024
        $region48: #{tpu_custom_call.1} parent=43 // pred_fallthru
          _
      $region44: #{tpu_custom_call.1} parent=5 // pred_fallthru
        _
    $region6: #{tpu_custom_call.1} parent=1 // loop_footer
      %s19 = sadd.s32 1, %s15
    $region7: #{tpu_custom_call.1} parent=1 // loop_footer_branch
      %14 = sbr.rel target = $region3
    $region8: #{tpu_custom_call.1} parent=1 // loop_exit
      _
    %659 = vsyncpa [#allocation3], 1
    %s660 = scalar_lea.sflag [#allocation3], 1
    %661 = vsyncpa %s660, 1
    %662 = vsyncpa [#allocation4], 1
    %s663 = scalar_lea.sflag [#allocation4], 1
    %664 = vsyncpa %s663, 1

</llo_original>
